<compile_context>
chip_gen: v7x
topology: tpu7x:2x2x1
jax: 0.10.0
libtpu: 0.0.40
codegen_flags: <defaults>
</compile_context>

<pallas_src>
import jax
import jax.numpy as jnp
from jax.experimental import pallas as pl
from jax.experimental.pallas import tpu as pltpu


def _ste_kernel(x_ref, o_ref):
    # Elementwise straight-through binarization: (x > 0) -> 1.0 else 0.0
    o_ref[...] = (x_ref[...] > 0).astype(jnp.float32)


def _target_out_block_bytes():
    """Generation-aware target for f32 output bytes per grid block."""
    vmem_cap = 128 << 20
    try:
        info = pltpu.get_tpu_info()
        vmem_cap = int(getattr(info, "vmem_capacity_bytes", vmem_cap))
    except Exception:
        pass
    if vmem_cap <= (64 << 20):
        # v7x: 64 MiB VMEM, ~3.2 TB/s HBM -> bigger blocks amortize the
        # ~0.35 us per-step overhead.  4 MiB out + 4 MiB in, double-buffered
        # = 16 MiB, under the 32 MiB default scoped VMEM.
        return 4 << 20
    # v5e / v6e: 2 MiB output blocks are ~85-88% of roofline and keep
    # double-buffered (in + out) well under v5e's 16 MiB default scoped VMEM.
    return 2 << 20


def straight_through_estimator(x):
    """Forward of StraightThroughEstimator: (x > 0).float(), same shape as x."""
    orig_shape = x.shape
    total = x.size

    # Sublane alignment requirement depends on input packing (f32:8, bf16:16, i8:32).
    itemsize = jnp.dtype(x.dtype).itemsize
    sub = {4: 8, 2: 16, 1: 32}.get(itemsize, 8)

    # Prefer the widest lane-dense layout that needs no tail at all.
    lane = None
    aligned_elems = None
    for w in (2048, 1024, 512, 256, 128):
        if total % (w * sub) == 0:
            lane = w
            aligned_elems = total
            break

    if aligned_elems is None:
        # Ragged size: run the kernel on the largest aligned prefix and handle
        # the tiny tail (< lane*sub elements) in plain JAX -- no jnp.pad, no
        # extra full-array HBM pass.
        for w in (2048, 1024, 512, 256, 128):
            chunk = w * sub
            if total >= chunk:
                lane = w
                aligned_elems = (total // chunk) * chunk
                break
        else:
            # Entire array is smaller than one (sub, 128) tile: pure JAX.
            return (x > 0).astype(jnp.float32)

    x_flat = jnp.ravel(x)
    has_tail = aligned_elems < total
    x_head = x_flat[:aligned_elems] if has_tail else x_flat

    rows = aligned_elems // lane
    x2d = x_head.reshape(rows, lane)

    # Block sizing: target_bytes of f32 output per block, rounded to the
    # sublane multiple.  Keep the default double-buffering; spend VMEM on
    # larger blocks, not deeper pipelines.
    target_bytes = _target_out_block_bytes()
    target_rows = max(sub, (target_bytes // (lane * 4)) // sub * sub)
    block_rows = min(rows, target_rows)

    # Ensure >= 2 blocks when the array allows it so v7x's two TensorCores
    # (grid axis is "parallel") both drive DMA.  No-op on v5e/v6e.
    if block_rows == rows and rows >= 2 * sub:
        half = -(-rows // 2)
        block_rows = -(-half // sub) * sub

    grid = (pl.cdiv(rows, block_rows),)

    out2d = pl.pallas_call(
        _ste_kernel,
        out_shape=jax.ShapeDtypeStruct((rows, lane), jnp.float32),
        grid_spec=pl.GridSpec(
            grid=grid,
            in_specs=[pl.BlockSpec((block_rows, lane), lambda i: (i, 0))],
            out_specs=pl.BlockSpec((block_rows, lane), lambda i: (i, 0)),
        ),
        compiler_params=pltpu.CompilerParams(
            dimension_semantics=("parallel",),
            vmem_limit_bytes=32 << 20,
        ),
    )(x2d)

    if has_tail:
        tail = (x_flat[aligned_elems:] > 0).astype(jnp.float32)
        return jnp.concatenate([out2d.reshape(-1), tail]).reshape(orig_shape)
    # Aligned path: reshape the kernel output directly to the original shape.
    return out2d.reshape(orig_shape)


if __name__ == "__main__":
    key = jax.random.PRNGKey(0)

    # Small NCHW-style input consistent with a generic forward: (2, 4, 16, 16)
    x = jax.random.normal(key, (2, 4, 16, 16), dtype=jnp.float32)
    y = straight_through_estimator(x)
    jax.block_until_ready(y)
    ref = (x > 0).astype(jnp.float32)
    assert y.shape == x.shape
    assert y.dtype == jnp.float32
    assert bool(jnp.all(y == ref))

    # Ragged (non sub x 128-aligned) shape exercises the prefix + tail path.
    x2 = jax.random.normal(jax.random.PRNGKey(1), (3, 5, 7, 11), dtype=jnp.float32)
    y2 = straight_through_estimator(x2)
    jax.block_until_ready(y2)
    ref2 = (x2 > 0).astype(jnp.float32)
    assert y2.shape == x2.shape
    assert y2.dtype == jnp.float32
    assert bool(jnp.all(y2 == ref2))

    # Tiny input smaller than one tile exercises the pure-JAX fallback.
    x3 = jax.random.normal(jax.random.PRNGKey(2), (4, 8), dtype=jnp.float32)
    y3 = straight_through_estimator(x3)
    jax.block_until_ready(y3)
    assert bool(jnp.all(y3 == (x3 > 0).astype(jnp.float32)))

    print("KERNEL_OK")
</pallas_src>

<mosaic_0001>
module attributes {stable_mosaic.version = 11 : i64} {
  func.func @_ste_kernel(%arg0: i32, %arg1: memref<8x256xf32, #tpu.memory_space<vmem>>, %arg2: memref<8x256xf32, #tpu.memory_space<vmem>>) attributes {dimension_semantics = [#tpu.dimension_semantics<parallel>], iteration_bounds = array<i64: 1>, scalar_prefetch = 0 : i64, scratch_operands = 0 : i64, tpu.core_type = #tpu.core_type<tc>, window_params = [{transform_indices = @transform_0, window_bounds = array<i64: 8, 256>}, {transform_indices = @transform_1, window_bounds = array<i64: 8, 256>}]} {
    %c0 = arith.constant 0 : index
    %c0_0 = arith.constant 0 : index
    %0 = vector.load %arg1[%c0, %c0_0] : memref<8x256xf32, #tpu.memory_space<vmem>>, vector<8x256xf32>
    %cst = arith.constant 0.000000e+00 : f32
    %1 = vector.broadcast %cst : f32 to vector<8x256xf32>
    %2 = arith.cmpf ogt, %0, %1 : vector<8x256xf32>
    %3 = arith.extui %2 : vector<8x256xi1> to vector<8x256xi32>
    %4 = arith.sitofp %3 : vector<8x256xi32> to vector<8x256xf32>
    %c0_1 = arith.constant 0 : index
    %c0_2 = arith.constant 0 : index
    %5 = vector.load %arg2[%c0_1, %c0_2] : memref<8x256xf32, #tpu.memory_space<vmem>>, vector<8x256xf32>
    tpu.vector_store %arg2[%c0_1, %c0_2], %4 {strides = array<i32>} : memref<8x256xf32, #tpu.memory_space<vmem>>, vector<8x256xf32>,
    return
  }
  func.func @transform_0(%arg0: i32) -> (i32, i32) {
    %c0_i32 = arith.constant 0 : i32
    %c0_i32_0 = arith.constant 0 : i32
    return %arg0, %c0_i32 : i32, i32
  }
  func.func @transform_1(%arg0: i32) -> (i32, i32) {
    %c0_i32 = arith.constant 0 : i32
    %c0_i32_0 = arith.constant 0 : i32
    return %arg0, %c0_i32 : i32, i32
  }
}

</mosaic_0001>

<llo_original>
// kernel: tpu_custom_call.1
$region0: #{tpu_custom_call.1}
  #allocation0 [shape = 'u32[]', space=smem, size = 0x4, offset = 0x4, fixed_abs, tag = 'smem constant byte address 0x4 - core index']
  #allocation1 [shape = 'u32[144,128]{1,0:T(1,128)}', space=vmem, size = 0x12000, scoped, tag = 'internal scratch']
  %s0 = inlined_call_operand.hbm [shape: f32[8,256], index: 0, kind: input, shape index: {}]
  %s1 = inlined_call_operand.hbm [shape: f32[8,256], index: 1, kind: output, shape index: {}]
  %s2 = sld [smem:[#allocation0]]
  $region18: #{tpu_custom_call.1} parent=0
    _
  %s4 = ssub.s32 1, %s2
  %s5 = scalar_select 0, %s4, %s2
  $region1: #{tpu_custom_call.1} parent=0
    #allocation2 [shape = 'u8[8192]{0}', space=vmem, size = 0x2000, scoped, tag = 'input window, operand 0, single buffered']
    #allocation3 [shape = 's32[1]{0}', space=sflag, size = 0x4, scoped, tag = 'scoped memory for tpu_custom_call.1']
    #allocation4 [shape = 's32[1]{0}', space=sflag, size = 0x4, scoped, tag = 'scoped memory for tpu_custom_call.1']
    #allocation5 [shape = 'u8[8192]{0}', space=vmem, size = 0x2000, scoped, tag = 'output window, operand 0, single buffered']
    %6 = vsyncpa [#allocation3], 0
    %7 = vsyncpa [#allocation4], 0
    // Predicated region
    $region2: #{tpu_custom_call.1} parent=1 // pred_check
      _
    $region3: #{tpu_custom_call.1} parent=1 // pred_check_branch
      %9 = sbr.rel (0) target = $region5
    $region4: #{tpu_custom_call.1} parent=1 // pred_region
      %s11 = ssub.s32 256, 256
      %12 = vsyncadd [#allocation3], %s11
      %s14 = sshll.u32 [#allocation2], 4
      %s15 = int_to_ptr.vmem [resolvable:$true] %s14
      %17 = dma.hbm_to_vmem [thread:$0]  %s0, 256, %s15, [#allocation3]
    $region5: #{tpu_custom_call.1} parent=1 // pred_fallthru
      _
    // Predicated region
    $region6: #{tpu_custom_call.1} parent=1 // pred_check
      _
    $region7: #{tpu_custom_call.1} parent=1 // pred_check_branch
      %19 = sbr.rel (0) target = $region9
    $region8: #{tpu_custom_call.1} parent=1 // pred_region
      %20 = dma.done [#allocation3], 256
    $region9: #{tpu_custom_call.1} parent=1 // pred_fallthru
      _
    %v21 = vld [vmem:[#allocation2] sm:$0xff]
    %v22 = vld [vmem:[#allocation2 + $0x8] sm:$0xff]
    %vm23 = vcmp.gt.f32.partialorder %v21, 0.0
    %vm24 = vcmp.gt.f32.partialorder %v22, 0.0
    %v25 = vsel %vm23, 1, 0
    %v26 = vsel %vm24, 1, 0
    %v27 = vcvt.s32.f32 %v25
    %v28 = vcvt.s32.f32 %v26
    %29 = vst [vmem:[#allocation5] sm:$0xff] %v27
    %30 = vst [vmem:[#allocation5 + $0x8] sm:$0xff] %v28
    // Predicated region
    $region10: #{tpu_custom_call.1} parent=1 // pred_check
      _
    $region11: #{tpu_custom_call.1} parent=1 // pred_check_branch
      %32 = sbr.rel (0) target = $region13
    $region12: #{tpu_custom_call.1} parent=1 // pred_region
      %s34 = ssub.s32 256, 256
      %35 = vsyncadd [#allocation4], %s34
      %s37 = sshll.u32 [#allocation5], 4
      %s38 = int_to_ptr.vmem [resolvable:$true] %s37
      %40 = dma.vmem_to_hbm [thread:$0]  %s38, 256, %s1, [#allocation4]
    $region13: #{tpu_custom_call.1} parent=1 // pred_fallthru
      _
    // Predicated region
    $region14: #{tpu_custom_call.1} parent=1 // pred_check
      _
    $region15: #{tpu_custom_call.1} parent=1 // pred_check_branch
      %42 = sbr.rel (0) target = $region17
    $region16: #{tpu_custom_call.1} parent=1 // pred_region
      %43 = dma.done [#allocation4], 256
    $region17: #{tpu_custom_call.1} parent=1 // pred_fallthru
      _
    %44 = vsyncpa [#allocation3], 1
    %45 = vsyncpa [#allocation4], 1

</llo_original>
